<compile_context>
chip_gen: v7x
topology: tpu7x:2x2x1
jax: 0.10.0
libtpu: 0.0.40
codegen_flags: <defaults>
</compile_context>

<pallas_src>
import functools
import math

import jax
import jax.numpy as jnp
from jax import lax
from jax.experimental import pallas as pl
from jax.experimental.pallas import tpu as pltpu

# PyTorch layer dims: nn.Linear(in, out) for each layer.
LAYER_DIMS = [(12, 16), (16, 32), (32, 32), (32, 32), (32, 16), (16, 12)]
N_LAYERS = len(LAYER_DIMS)
IN_DIM = LAYER_DIMS[0][0]     # 12
OUT_DIM = LAYER_DIMS[-1][1]   # 12
PAD_DIM = 32                  # every layer width zero-padded to 32 for packing
LANE = 128

# Sublane-rounded real output widths for the feature-major layers 0..4.
# (Layer 5 produces the natural-layout (BT, 12) output directly.)
_WIDTHS = (16, 32, 32, 32, 16)


def _round_up(x, m):
    return ((x + m - 1) // m) * m


def pack_params(weights, biases):
    """Pack PyTorch-layout (out, in) weights and (out,) biases into zero-padded
    slabs consumed by the kernel:
      w_packed: (6, 32, 32) f32   b_packed: (6, 32, 1) f32   b_last: (1, 12) f32
    """
    wp = jnp.zeros((N_LAYERS, PAD_DIM, PAD_DIM), jnp.float32)
    bp = jnp.zeros((N_LAYERS, PAD_DIM, 1), jnp.float32)
    for l, ((fin, fout), w, b) in enumerate(zip(LAYER_DIMS, weights, biases)):
        assert w.shape == (fout, fin) and b.shape == (fout,)
        wp = wp.at[l, :fout, :fin].set(w.astype(jnp.float32))
        bp = bp.at[l, :fout, 0].set(b.astype(jnp.float32))
    # Last-layer bias kept separately as a (1, 12) row so it broadcasts over the
    # natural-layout (BT, 12) output tile without any in-kernel transpose.
    b_last = biases[-1].astype(jnp.float32).reshape(1, OUT_DIM)
    return wp, bp, b_last


def _sigmoid(z):
    # Single-transcendental sigmoid: sigmoid(z) = 0.5 * tanh(z / 2) + 0.5.
    return 0.5 * jnp.tanh(0.5 * z) + 0.5


def _autoencoder_kernel(x_ref, w_ref, b_ref, bl_ref, o_ref, *, compute_dtype):
    """Fused 6-layer MLP on one batch tile.

    x_ref : (BT, 12)  natural layout input tile
    w_ref : (6, 32, 32) zero-padded PyTorch-layout weights
    b_ref : (6, 32, 1)  zero-padded biases (layers 0..4 used here)
    bl_ref: (1, 12)     last-layer bias (row layout)
    o_ref : (BT, 12)    natural layout output tile
    """
    cd = compute_dtype
    x = x_ref[...].astype(cd)                                        # (BT, 12)

    # ---- Layer 0: contract x's feature axis (NT matmul) -> feature-major
    # activations (16, BT) with the batch on the lane axis.
    w0 = w_ref[0][:_WIDTHS[0], :IN_DIM].astype(cd)                   # (16, 12)
    z = lax.dot_general(w0, x, (((1,), (1,)), ((), ())),
                        preferred_element_type=jnp.float32)
    z = z + b_ref[0][:_WIDTHS[0]]                                    # (16, BT)
    h = _sigmoid(z.astype(cd))

    # ---- Hidden layers 1..4: feature-major (out_l, BT), real rows only.
    for l in range(1, N_LAYERS - 1):
        fin, fout = _WIDTHS[l - 1], _WIDTHS[l]
        w = w_ref[l][:fout, :fin].astype(cd)                         # (fout, fin)
        z = jnp.dot(w, h, preferred_element_type=jnp.float32)
        z = z + b_ref[l][:fout]                                      # (fout, BT)
        h = _sigmoid(z.astype(cd))

    # ---- Layer 5: contract h's feature axis (dim 0) against w5's input axis to
    # produce a natural-layout (BT, 12) tile directly (no wrapper transpose).
    w5 = w_ref[N_LAYERS - 1][:OUT_DIM, :_WIDTHS[-1]].astype(cd)      # (12, 16)
    z = lax.dot_general(h, w5, (((0,), (1,)), ((), ())),
                        preferred_element_type=jnp.float32)
    z = z + bl_ref[...]                                              # (BT, 12)
    o_ref[...] = _sigmoid(z.astype(cd)).astype(o_ref.dtype)


@functools.partial(jax.jit, static_argnames=("max_batch_tile", "compute_dtype"))
def autoencoder_forward(x, w_packed, b_packed, b_last, *,
                        max_batch_tile=8192, compute_dtype=jnp.float32):
    """Fused autoencoder forward pass.

    x:        (B, 12) float32 (or bfloat16).
    w_packed: (6, 32, 32) f32, b_packed: (6, 32, 1) f32, b_last: (1, 12) f32
              (from pack_params).
    compute_dtype: jnp.float32 (default, and recommended on v5e) or
              jnp.bfloat16 (recommended on v6e / v7x; MXU accumulation stays f32).
    """
    B, fin = x.shape
    assert fin == IN_DIM
    assert max_batch_tile % LANE == 0

    b_padded = _round_up(max(B, LANE), LANE)
    # Balanced tile choice: enough steps to keep each tile <= max_batch_tile, at
    # least 2 steps (and an even count) once there is >= 2*LANE of work so the
    # "parallel" batch axis shards evenly across both v7x TensorCores.  The extra
    # grid step costs only ~0.35us on single-core chips.
    min_steps = 2 if b_padded >= 2 * LANE else 1
    n_steps = max(pl.cdiv(b_padded, max_batch_tile), min_steps)
    if n_steps > 1 and n_steps % 2 == 1:
        n_steps += 1
    batch_tile = _round_up(pl.cdiv(b_padded, n_steps), LANE)
    b_padded = _round_up(b_padded, batch_tile)
    grid = (b_padded // batch_tile,)

    if b_padded != B:
        # Zero rows are harmless: each batch row is independent and extra output
        # rows are sliced off below.
        x = jnp.pad(x, ((0, b_padded - B), (0, 0)))

    kernel = functools.partial(_autoencoder_kernel, compute_dtype=compute_dtype)
    out = pl.pallas_call(
        kernel,
        out_shape=jax.ShapeDtypeStruct((b_padded, OUT_DIM), x.dtype),
        grid_spec=pltpu.PrefetchScalarGridSpec(
            num_scalar_prefetch=0,
            grid=grid,
            in_specs=[
                pl.BlockSpec((batch_tile, IN_DIM), lambda i: (i, 0)),
                pl.BlockSpec((N_LAYERS, PAD_DIM, PAD_DIM), lambda i: (0, 0, 0)),
                pl.BlockSpec((N_LAYERS, PAD_DIM, 1), lambda i: (0, 0, 0)),
                pl.BlockSpec((1, OUT_DIM), lambda i: (0, 0)),
            ],
            out_specs=pl.BlockSpec((batch_tile, OUT_DIM), lambda i: (i, 0)),
        ),
        compiler_params=pltpu.CompilerParams(
            dimension_semantics=("parallel",),
            vmem_limit_bytes=32 * 1024 * 1024),
    )(x, w_packed, b_packed, b_last)

    return out[:B] if b_padded != B else out


def init_params(key):
    """PyTorch nn.Linear default init: U(-1/sqrt(fan_in), 1/sqrt(fan_in)),
    weights stored in torch layout (out, in)."""
    weights, biases = [], []
    for (fan_in, fan_out) in LAYER_DIMS:
        key, kw, kb = jax.random.split(key, 3)
        bound = 1.0 / math.sqrt(fan_in)
        w = jax.random.uniform(kw, (fan_out, fan_in), jnp.float32,
                               minval=-bound, maxval=bound)
        b = jax.random.uniform(kb, (fan_out,), jnp.float32,
                               minval=-bound, maxval=bound)
        weights.append(w)
        biases.append(b)
    return weights, biases


def reference_forward(x, weights, biases):
    """Pure-JAX reference matching the PyTorch forward."""
    h = x
    for w, b in zip(weights, biases):
        h = jax.nn.sigmoid(h @ w.T + b)
    return h


if __name__ == "__main__":
    key = jax.random.PRNGKey(0)
    key, kx1, kx2 = jax.random.split(key, 3)
    weights, biases = init_params(key)
    w_packed, b_packed, b_last = pack_params(weights, biases)

    # Small, lane-aligned batch (single grid step).
    B1 = 64
    x1 = jax.random.normal(kx1, (B1, IN_DIM), jnp.float32)
    out1 = jax.block_until_ready(
        autoencoder_forward(x1, w_packed, b_packed, b_last))
    ref1 = reference_forward(x1, weights, biases)
    assert out1.shape == (B1, OUT_DIM)
    # Tolerance covers transcendental / accumulation-order rounding only.
    assert jnp.allclose(out1, ref1, atol=1e-4, rtol=1e-4)

    # Non-multiple-of-128 batch exercises the padding + 2-step grid path.
    B2 = 300
    x2 = jax.random.normal(kx2, (B2, IN_DIM), jnp.float32)
    out2 = jax.block_until_ready(
        autoencoder_forward(x2, w_packed, b_packed, b_last))
    ref2 = reference_forward(x2, weights, biases)
    assert out2.shape == (B2, OUT_DIM)
    assert jnp.allclose(out2, ref2, atol=1e-4, rtol=1e-4)

    # bf16 compute path (recommended on v6e/v7x; keep the f32 default on v5e).
    out3 = jax.block_until_ready(
        autoencoder_forward(x2, w_packed, b_packed, b_last,
                            compute_dtype=jnp.bfloat16))
    assert out3.shape == (B2, OUT_DIM)
    assert jnp.allclose(out3, ref2, atol=5e-2, rtol=5e-2)

    print("KERNEL_OK")
</pallas_src>

<mosaic_0001>
module attributes {stable_mosaic.version = 11 : i64} {
  func.func @_autoencoder_kernel(%arg0: i32, %arg1: memref<128x12xf32, #tpu.memory_space<vmem>>, %arg2: memref<6x32x32xf32, #tpu.memory_space<vmem>>, %arg3: memref<6x32x1xf32, #tpu.memory_space<vmem>>, %arg4: memref<1x12xf32, #tpu.memory_space<vmem>>, %arg5: memref<128x12xf32, #tpu.memory_space<vmem>>) attributes {dimension_semantics = [#tpu.dimension_semantics<parallel>], iteration_bounds = array<i64: 1>, scalar_prefetch = 0 : i64, scratch_operands = 0 : i64, tpu.core_type = #tpu.core_type<tc>, window_params = [{transform_indices = @transform_0, window_bounds = array<i64: 128, 12>}, {pipeline_mode = #tpu.pipeline_mode<synchronous>, transform_indices = @transform_1, window_bounds = array<i64: 6, 32, 32>}, {pipeline_mode = #tpu.pipeline_mode<synchronous>, transform_indices = @transform_2, window_bounds = array<i64: 6, 32, 1>}, {pipeline_mode = #tpu.pipeline_mode<synchronous>, transform_indices = @transform_3, window_bounds = array<i64: 1, 12>}, {transform_indices = @transform_4, window_bounds = array<i64: 128, 12>}]} {
    %c0 = arith.constant 0 : index
    %c0_0 = arith.constant 0 : index
    %0 = vector.load %arg1[%c0, %c0_0] : memref<128x12xf32, #tpu.memory_space<vmem>>, vector<128x12xf32>
    %c0_1 = arith.constant 0 : index
    %c0_2 = arith.constant 0 : index
    %c0_3 = arith.constant 0 : index
    %1 = vector.load %arg2[%c0_1, %c0_2, %c0_3] : memref<6x32x32xf32, #tpu.memory_space<vmem>>, vector<1x32x32xf32>
    %2 = vector.shape_cast %1 : vector<1x32x32xf32> to vector<32x32xf32>
    %3 = vector.extract_strided_slice %2 {offsets = [0, 0], sizes = [16, 12], strides = [1, 1]} : vector<32x32xf32> to vector<16x12xf32>
    %cst = arith.constant dense<0.000000e+00> : vector<16x128xf32>
    %4 = tpu.matmul %3, %0, %cst {dimension_numbers = #tpu.dot_dimension_numbers<[1], [1], [0], [0], [0, 0, 1, 0], [], []>} : vector<16x12xf32>, vector<128x12xf32>, vector<16x128xf32> -> vector<16x128xf32>
    %c0_4 = arith.constant 0 : index
    %c0_5 = arith.constant 0 : index
    %c0_6 = arith.constant 0 : index
    %5 = vector.load %arg3[%c0_4, %c0_5, %c0_6] : memref<6x32x1xf32, #tpu.memory_space<vmem>>, vector<1x32x1xf32>
    %6 = vector.shape_cast %5 : vector<1x32x1xf32> to vector<32x1xf32>
    %7 = vector.extract_strided_slice %6 {offsets = [0, 0], sizes = [16, 1], strides = [1, 1]} : vector<32x1xf32> to vector<16x1xf32>
    %8 = vector.broadcast %7 : vector<16x1xf32> to vector<16x128xf32>
    %9 = arith.addf %4, %8 : vector<16x128xf32>
    %cst_7 = arith.constant 5.000000e-01 : f32
    %10 = vector.broadcast %cst_7 : f32 to vector<16x128xf32>
    %11 = arith.mulf %10, %9 : vector<16x128xf32>
    %12 = math.tanh %11 : vector<16x128xf32>
    %cst_8 = arith.constant 5.000000e-01 : f32
    %13 = vector.broadcast %cst_8 : f32 to vector<16x128xf32>
    %14 = arith.mulf %13, %12 : vector<16x128xf32>
    %cst_9 = arith.constant 5.000000e-01 : f32
    %15 = vector.broadcast %cst_9 : f32 to vector<16x128xf32>
    %16 = arith.addf %14, %15 : vector<16x128xf32>
    %c1 = arith.constant 1 : index
    %c0_10 = arith.constant 0 : index
    %c0_11 = arith.constant 0 : index
    %17 = vector.load %arg2[%c1, %c0_10, %c0_11] : memref<6x32x32xf32, #tpu.memory_space<vmem>>, vector<1x32x32xf32>
    %18 = vector.shape_cast %17 : vector<1x32x32xf32> to vector<32x32xf32>
    %19 = vector.extract_strided_slice %18 {offsets = [0, 0], sizes = [32, 16], strides = [1, 1]} : vector<32x32xf32> to vector<32x16xf32>
    %cst_12 = arith.constant dense<0.000000e+00> : vector<32x128xf32>
    %20 = tpu.matmul %19, %16, %cst_12 {dimension_numbers = #tpu.dot_dimension_numbers<[1], [0], [0], [1], [0, 0, 1, 1], [], []>} : vector<32x16xf32>, vector<16x128xf32>, vector<32x128xf32> -> vector<32x128xf32>
    %c1_13 = arith.constant 1 : index
    %c0_14 = arith.constant 0 : index
    %c0_15 = arith.constant 0 : index
    %21 = vector.load %arg3[%c1_13, %c0_14, %c0_15] : memref<6x32x1xf32, #tpu.memory_space<vmem>>, vector<1x32x1xf32>
    %22 = vector.shape_cast %21 : vector<1x32x1xf32> to vector<32x1xf32>
    %23 = vector.broadcast %22 : vector<32x1xf32> to vector<32x128xf32>
    %24 = arith.addf %20, %23 : vector<32x128xf32>
    %cst_16 = arith.constant 5.000000e-01 : f32
    %25 = vector.broadcast %cst_16 : f32 to vector<32x128xf32>
    %26 = arith.mulf %25, %24 : vector<32x128xf32>
    %27 = math.tanh %26 : vector<32x128xf32>
    %cst_17 = arith.constant 5.000000e-01 : f32
    %28 = vector.broadcast %cst_17 : f32 to vector<32x128xf32>
    %29 = arith.mulf %28, %27 : vector<32x128xf32>
    %cst_18 = arith.constant 5.000000e-01 : f32
    %30 = vector.broadcast %cst_18 : f32 to vector<32x128xf32>
    %31 = arith.addf %29, %30 : vector<32x128xf32>
    %c2 = arith.constant 2 : index
    %c0_19 = arith.constant 0 : index
    %c0_20 = arith.constant 0 : index
    %32 = vector.load %arg2[%c2, %c0_19, %c0_20] : memref<6x32x32xf32, #tpu.memory_space<vmem>>, vector<1x32x32xf32>
    %33 = vector.shape_cast %32 : vector<1x32x32xf32> to vector<32x32xf32>
    %cst_21 = arith.constant dense<0.000000e+00> : vector<32x128xf32>
    %34 = tpu.matmul %33, %31, %cst_21 {dimension_numbers = #tpu.dot_dimension_numbers<[1], [0], [0], [1], [0, 0, 1, 1], [], []>} : vector<32x32xf32>, vector<32x128xf32>, vector<32x128xf32> -> vector<32x128xf32>
    %c2_22 = arith.constant 2 : index
    %c0_23 = arith.constant 0 : index
    %c0_24 = arith.constant 0 : index
    %35 = vector.load %arg3[%c2_22, %c0_23, %c0_24] : memref<6x32x1xf32, #tpu.memory_space<vmem>>, vector<1x32x1xf32>
    %36 = vector.shape_cast %35 : vector<1x32x1xf32> to vector<32x1xf32>
    %37 = vector.broadcast %36 : vector<32x1xf32> to vector<32x128xf32>
    %38 = arith.addf %34, %37 : vector<32x128xf32>
    %cst_25 = arith.constant 5.000000e-01 : f32
    %39 = vector.broadcast %cst_25 : f32 to vector<32x128xf32>
    %40 = arith.mulf %39, %38 : vector<32x128xf32>
    %41 = math.tanh %40 : vector<32x128xf32>
    %cst_26 = arith.constant 5.000000e-01 : f32
    %42 = vector.broadcast %cst_26 : f32 to vector<32x128xf32>
    %43 = arith.mulf %42, %41 : vector<32x128xf32>
    %cst_27 = arith.constant 5.000000e-01 : f32
    %44 = vector.broadcast %cst_27 : f32 to vector<32x128xf32>
    %45 = arith.addf %43, %44 : vector<32x128xf32>
    %c3 = arith.constant 3 : index
    %c0_28 = arith.constant 0 : index
    %c0_29 = arith.constant 0 : index
    %46 = vector.load %arg2[%c3, %c0_28, %c0_29] : memref<6x32x32xf32, #tpu.memory_space<vmem>>, vector<1x32x32xf32>
    %47 = vector.shape_cast %46 : vector<1x32x32xf32> to vector<32x32xf32>
    %cst_30 = arith.constant dense<0.000000e+00> : vector<32x128xf32>
    %48 = tpu.matmul %47, %45, %cst_30 {dimension_numbers = #tpu.dot_dimension_numbers<[1], [0], [0], [1], [0, 0, 1, 1], [], []>} : vector<32x32xf32>, vector<32x128xf32>, vector<32x128xf32> -> vector<32x128xf32>
    %c3_31 = arith.constant 3 : index
    %c0_32 = arith.constant 0 : index
    %c0_33 = arith.constant 0 : index
    %49 = vector.load %arg3[%c3_31, %c0_32, %c0_33] : memref<6x32x1xf32, #tpu.memory_space<vmem>>, vector<1x32x1xf32>
    %50 = vector.shape_cast %49 : vector<1x32x1xf32> to vector<32x1xf32>
    %51 = vector.broadcast %50 : vector<32x1xf32> to vector<32x128xf32>
    %52 = arith.addf %48, %51 : vector<32x128xf32>
    %cst_34 = arith.constant 5.000000e-01 : f32
    %53 = vector.broadcast %cst_34 : f32 to vector<32x128xf32>
    %54 = arith.mulf %53, %52 : vector<32x128xf32>
    %55 = math.tanh %54 : vector<32x128xf32>
    %cst_35 = arith.constant 5.000000e-01 : f32
    %56 = vector.broadcast %cst_35 : f32 to vector<32x128xf32>
    %57 = arith.mulf %56, %55 : vector<32x128xf32>
    %cst_36 = arith.constant 5.000000e-01 : f32
    %58 = vector.broadcast %cst_36 : f32 to vector<32x128xf32>
    %59 = arith.addf %57, %58 : vector<32x128xf32>
    %c4 = arith.constant 4 : index
    %c0_37 = arith.constant 0 : index
    %c0_38 = arith.constant 0 : index
    %60 = vector.load %arg2[%c4, %c0_37, %c0_38] : memref<6x32x32xf32, #tpu.memory_space<vmem>>, vector<1x32x32xf32>
    %61 = vector.shape_cast %60 : vector<1x32x32xf32> to vector<32x32xf32>
    %62 = vector.extract_strided_slice %61 {offsets = [0, 0], sizes = [16, 32], strides = [1, 1]} : vector<32x32xf32> to vector<16x32xf32>
    %cst_39 = arith.constant dense<0.000000e+00> : vector<16x128xf32>
    %63 = tpu.matmul %62, %59, %cst_39 {dimension_numbers = #tpu.dot_dimension_numbers<[1], [0], [0], [1], [0, 0, 1, 1], [], []>} : vector<16x32xf32>, vector<32x128xf32>, vector<16x128xf32> -> vector<16x128xf32>
    %c4_40 = arith.constant 4 : index
    %c0_41 = arith.constant 0 : index
    %c0_42 = arith.constant 0 : index
    %64 = vector.load %arg3[%c4_40, %c0_41, %c0_42] : memref<6x32x1xf32, #tpu.memory_space<vmem>>, vector<1x32x1xf32>
    %65 = vector.shape_cast %64 : vector<1x32x1xf32> to vector<32x1xf32>
    %66 = vector.extract_strided_slice %65 {offsets = [0, 0], sizes = [16, 1], strides = [1, 1]} : vector<32x1xf32> to vector<16x1xf32>
    %67 = vector.broadcast %66 : vector<16x1xf32> to vector<16x128xf32>
    %68 = arith.addf %63, %67 : vector<16x128xf32>
    %cst_43 = arith.constant 5.000000e-01 : f32
    %69 = vector.broadcast %cst_43 : f32 to vector<16x128xf32>
    %70 = arith.mulf %69, %68 : vector<16x128xf32>
    %71 = math.tanh %70 : vector<16x128xf32>
    %cst_44 = arith.constant 5.000000e-01 : f32
    %72 = vector.broadcast %cst_44 : f32 to vector<16x128xf32>
    %73 = arith.mulf %72, %71 : vector<16x128xf32>
    %cst_45 = arith.constant 5.000000e-01 : f32
    %74 = vector.broadcast %cst_45 : f32 to vector<16x128xf32>
    %75 = arith.addf %73, %74 : vector<16x128xf32>
    %c5 = arith.constant 5 : index
    %c0_46 = arith.constant 0 : index
    %c0_47 = arith.constant 0 : index
    %76 = vector.load %arg2[%c5, %c0_46, %c0_47] : memref<6x32x32xf32, #tpu.memory_space<vmem>>, vector<1x32x32xf32>
    %77 = vector.shape_cast %76 : vector<1x32x32xf32> to vector<32x32xf32>
    %78 = vector.extract_strided_slice %77 {offsets = [0, 0], sizes = [12, 16], strides = [1, 1]} : vector<32x32xf32> to vector<12x16xf32>
    %cst_48 = arith.constant dense<0.000000e+00> : vector<128x12xf32>
    %79 = tpu.matmul %75, %78, %cst_48 {dimension_numbers = #tpu.dot_dimension_numbers<[0], [1], [1], [0], [0, 1, 1, 0], [], []>} : vector<16x128xf32>, vector<12x16xf32>, vector<128x12xf32> -> vector<128x12xf32>
    %c0_49 = arith.constant 0 : index
    %c0_50 = arith.constant 0 : index
    %80 = vector.load %arg4[%c0_49, %c0_50] : memref<1x12xf32, #tpu.memory_space<vmem>>, vector<1x12xf32>
    %81 = vector.broadcast %80 : vector<1x12xf32> to vector<128x12xf32>
    %82 = arith.addf %79, %81 : vector<128x12xf32>
    %cst_51 = arith.constant 5.000000e-01 : f32
    %83 = vector.broadcast %cst_51 : f32 to vector<128x12xf32>
    %84 = arith.mulf %83, %82 : vector<128x12xf32>
    %85 = math.tanh %84 : vector<128x12xf32>
    %cst_52 = arith.constant 5.000000e-01 : f32
    %86 = vector.broadcast %cst_52 : f32 to vector<128x12xf32>
    %87 = arith.mulf %86, %85 : vector<128x12xf32>
    %cst_53 = arith.constant 5.000000e-01 : f32
    %88 = vector.broadcast %cst_53 : f32 to vector<128x12xf32>
    %89 = arith.addf %87, %88 : vector<128x12xf32>
    %c0_54 = arith.constant 0 : index
    %c0_55 = arith.constant 0 : index
    %90 = vector.load %arg5[%c0_54, %c0_55] : memref<128x12xf32, #tpu.memory_space<vmem>>, vector<128x12xf32>
    tpu.vector_store %arg5[%c0_54, %c0_55], %89 {strides = array<i32>} : memref<128x12xf32, #tpu.memory_space<vmem>>, vector<128x12xf32>,
    return
  }
  func.func @transform_0(%arg0: i32) -> (i32, i32) {
    %c0_i32 = arith.constant 0 : i32
    %c0_i32_0 = arith.constant 0 : i32
    return %arg0, %c0_i32 : i32, i32
  }
  func.func @transform_1(%arg0: i32) -> (i32, i32, i32) {
    %c0_i32 = arith.constant 0 : i32
    %c0_i32_0 = arith.constant 0 : i32
    %c0_i32_1 = arith.constant 0 : i32
    %c0_i32_2 = arith.constant 0 : i32
    return %c0_i32, %c0_i32_0, %c0_i32_1 : i32, i32, i32
  }
  func.func @transform_2(%arg0: i32) -> (i32, i32, i32) {
    %c0_i32 = arith.constant 0 : i32
    %c0_i32_0 = arith.constant 0 : i32
    %c0_i32_1 = arith.constant 0 : i32
    %c0_i32_2 = arith.constant 0 : i32
    return %c0_i32, %c0_i32_0, %c0_i32_1 : i32, i32, i32
  }
  func.func @transform_3(%arg0: i32) -> (i32, i32) {
    %c0_i32 = arith.constant 0 : i32
    %c0_i32_0 = arith.constant 0 : i32
    %c0_i32_1 = arith.constant 0 : i32
    return %c0_i32, %c0_i32_0 : i32, i32
  }
  func.func @transform_4(%arg0: i32) -> (i32, i32) {
    %c0_i32 = arith.constant 0 : i32
    %c0_i32_0 = arith.constant 0 : i32
    return %arg0, %c0_i32 : i32, i32
  }
}

</mosaic_0001>

<llo_original>
// kernel: autoencoder_forward.1
$region0: #{autoencoder_forward.1}
  #allocation0 [shape = 'u32[]', space=smem, size = 0x4, offset = 0x4, fixed_abs, tag = 'smem constant byte address 0x4 - core index']
  #allocation1 [shape = 'u32[144,128]{1,0:T(1,128)}', space=vmem, size = 0x12000, scoped, tag = 'internal scratch']
  %s0 = inlined_call_operand.vmem [shape: f32[128,12], index: 0, kind: input, shape index: {}]
  %s1 = inlined_call_operand.vmem [shape: f32[6,32,32], index: 1, kind: input, shape index: {}]
  %s2 = inlined_call_operand.vmem [shape: f32[6,32,1], index: 2, kind: input, shape index: {}]
  %s3 = inlined_call_operand.vmem [shape: f32[1,12], index: 3, kind: input, shape index: {}]
  %s4 = inlined_call_operand.vmem [shape: f32[128,12], index: 4, kind: output, shape index: {}]
  %s5 = sld [smem:[#allocation0]]
  $region26: #{autoencoder_forward.1} parent=0
    _
  %s7 = ssub.s32 1, %s5
  %s8 = scalar_select 0, %s7, %s5
  // Predicated region
  $region2: #{autoencoder_forward.1} parent=0 // pred_check
    _
  $region3: #{autoencoder_forward.1} parent=0 // pred_check_branch
    %10 = sbr.rel (0) target = $region5
  $region4: #{autoencoder_forward.1} parent=0 // pred_region
    _
  $region5: #{autoencoder_forward.1} parent=0 // pred_fallthru
    _
  // Predicated region
  $region6: #{autoencoder_forward.1} parent=0 // pred_check
    _
  $region7: #{autoencoder_forward.1} parent=0 // pred_check_branch
    %12 = sbr.rel (0) target = $region9
  $region8: #{autoencoder_forward.1} parent=0 // pred_region
    _
  $region9: #{autoencoder_forward.1} parent=0 // pred_fallthru
    _
  // Predicated region
  $region10: #{autoencoder_forward.1} parent=0 // pred_check
    _
  $region11: #{autoencoder_forward.1} parent=0 // pred_check_branch
    %14 = sbr.rel (0) target = $region13
  $region12: #{autoencoder_forward.1} parent=0 // pred_region
    _
  $region13: #{autoencoder_forward.1} parent=0 // pred_fallthru
    _
  // Predicated region
  $region14: #{autoencoder_forward.1} parent=0 // pred_check
    _
  $region15: #{autoencoder_forward.1} parent=0 // pred_check_branch
    %16 = sbr.rel (0) target = $region17
  $region16: #{autoencoder_forward.1} parent=0 // pred_region
    _
  $region17: #{autoencoder_forward.1} parent=0 // pred_fallthru
    _
  %v17 = vld [vmem:[%s0] sm:$0xff]
  %v18 = vld [vmem:[%s0 + $0x8] sm:$0xff]
  %v19 = vld [vmem:[%s0 + $0x10] sm:$0xff]
  %v20 = vld [vmem:[%s0 + $0x18] sm:$0xff]
  %v21 = vld [vmem:[%s0 + $0x20] sm:$0xff]
  %v22 = vld [vmem:[%s0 + $0x28] sm:$0xff]
  %v23 = vld [vmem:[%s0 + $0x30] sm:$0xff]
  %v24 = vld [vmem:[%s0 + $0x38] sm:$0xff]
  %v25 = vld [vmem:[%s0 + $0x40] sm:$0xff]
  %v26 = vld [vmem:[%s0 + $0x48] sm:$0xff]
  %v27 = vld [vmem:[%s0 + $0x50] sm:$0xff]
  %v28 = vld [vmem:[%s0 + $0x58] sm:$0xff]
  %v29 = vld [vmem:[%s0 + $0x60] sm:$0xff]
  %v30 = vld [vmem:[%s0 + $0x68] sm:$0xff]
  %v31 = vld [vmem:[%s0 + $0x70] sm:$0xff]
  %v32 = vld [vmem:[%s0 + $0x78] sm:$0xff]
  %v33 = vld [vmem:[%s1] sm:$0xff]
  %v34 = vld [vmem:[%s1 + $0x8] sm:$0xff]
  %v35 = vld [vmem:[%s2] sm:$0xff]
  %v36 = vld [vmem:[%s2 + $0x8] sm:$0xff]
  %38 = vset.pattern.permute.xlu0 0
  %39 = vperm.xlu0 %38, %v35
  %v40 = vpop.permute.xlu0 %39
  %43 = vset.pattern.permute.xlu0 0
  %44 = vperm.xlu0 %43, %v36
  %v45 = vpop.permute.xlu0 %44
  %vm47 = vcmask 97280
  %v49 = vsel %vm47, %v33, 0
  %v52 = vsel %vm47, %v34, 0
  %v55 = vsel %vm47, %v17, 0
  %v58 = vsel %vm47, %v18, 0
  %v61 = vsel %vm47, %v19, 0
  %v64 = vsel %vm47, %v20, 0
  %v67 = vsel %vm47, %v21, 0
  %v70 = vsel %vm47, %v22, 0
  %v73 = vsel %vm47, %v23, 0
  %v76 = vsel %vm47, %v24, 0
  %v79 = vsel %vm47, %v25, 0
  %v82 = vsel %vm47, %v26, 0
  %v85 = vsel %vm47, %v27, 0
  %v88 = vsel %vm47, %v28, 0
  %v91 = vsel %vm47, %v29, 0
  %v94 = vsel %vm47, %v30, 0
  %v97 = vsel %vm47, %v31, 0
  %v100 = vsel %vm47, %v32, 0
  %102 = vmatprep.subr.mxu0 0.0
  %103 = vmatpush1.xpose.msra.mxu0 %v55
  %104 = vmatprep.subr.mxu0 0.0
  %105 = vmatpush1.xpose.msra.mxu0 %v58
  %106 = vmatprep.subr.mxu0 0.0
  %107 = vmatpush1.xpose.msra.mxu0 %v61
  %108 = vmatprep.subr.mxu0 0.0
  %109 = vmatpush1.xpose.msra.mxu0 %v64
  %110 = vmatprep.subr.mxu0 0.0
  %111 = vmatpush1.xpose.msra.mxu0 %v67
  %112 = vmatprep.subr.mxu0 0.0
  %113 = vmatpush1.xpose.msra.mxu0 %v70
  %114 = vmatprep.subr.mxu0 0.0
  %115 = vmatpush1.xpose.msra.mxu0 %v73
  %116 = vmatprep.subr.mxu0 0.0
  %117 = vmatpush1.xpose.msra.mxu0 %v76
  %118 = vmatprep.subr.mxu0 0.0
  %119 = vmatpush1.xpose.msra.mxu0 %v79
  %120 = vmatprep.subr.mxu0 0.0
  %121 = vmatpush1.xpose.msra.mxu0 %v82
  %122 = vmatprep.subr.mxu0 0.0
  %123 = vmatpush1.xpose.msra.mxu0 %v85
  %124 = vmatprep.subr.mxu0 0.0
  %125 = vmatpush1.xpose.msra.mxu0 %v88
  %126 = vmatprep.subr.mxu0 0.0
  %127 = vmatpush1.xpose.msra.mxu0 %v91
  %128 = vmatprep.subr.mxu0 0.0
  %129 = vmatpush1.xpose.msra.mxu0 %v94
  %130 = vmatprep.subr.mxu0 0.0
  %131 = vmatpush1.xpose.msra.mxu0 %v97
  %132 = vmatprep.subr.mxu0 0.0
  %133 = vmatpush1.xpose.msra.mxu0 %v100
  %134 = vmatprep.subr.mxu0 0.0
  %135 = vmatpush1.xpose.msra.mxu0 0.0
  %136 = vmatprep.subr.mxu0 0.0
  %137 = vmatpush1.xpose.msra.mxu0 0.0
  %138 = vmatprep.subr.mxu0 0.0
  %139 = vmatpush1.xpose.msra.mxu0 0.0
  %140 = vmatprep.subr.mxu0 0.0
  %141 = vmatpush1.xpose.msra.mxu0 0.0
  %142 = vmatprep.subr.mxu0 0.0
  %143 = vmatpush1.xpose.msra.mxu0 0.0
  %144 = vmatprep.subr.mxu0 0.0
  %145 = vmatpush1.xpose.msra.mxu0 0.0
  %146 = vmatprep.subr.mxu0 0.0
  %147 = vmatpush1.xpose.msra.mxu0 0.0
  %148 = vmatprep.subr.mxu0 0.0
  %149 = vmatpush1.xpose.msra.mxu0 0.0
  %150 = vmatprep.subr.mxu0 0.0
  %151 = vmatpush1.xpose.msra.mxu0 0.0
  %152 = vmatprep.subr.mxu0 0.0
  %153 = vmatpush1.xpose.msra.mxu0 0.0
  %154 = vmatprep.subr.mxu0 0.0
  %155 = vmatpush1.xpose.msra.mxu0 0.0
  %156 = vmatprep.subr.mxu0 0.0
  %157 = vmatpush1.xpose.msra.mxu0 0.0
  %158 = vmatprep.subr.mxu0 0.0
  %159 = vmatpush1.xpose.msra.mxu0 0.0
  %160 = vmatprep.subr.mxu0 0.0
  %161 = vmatpush1.xpose.msra.mxu0 0.0
  %162 = vmatprep.subr.mxu0 0.0
  %163 = vmatpush1.xpose.msra.mxu0 0.0
  %164 = vmatprep.subr.mxu0 0.0
  %165 = vmatpush1.xpose.msra.mxu0 0.0
  %166 = vmatprep.mubr.f32.mxu0 0.0
  %167 = vmatmul.mubr.f32.gmra.mrb[0].mxu0 %v49
  %v168 = vpop.f32.mrb[0].mxu0
  %v169 = vadd.f32 %v40, %v168
  %v170 = vpop.f32.mrb[0].mxu0
  %171 = vmatprep.mubr.f32.mxu0 0.0
  %172 = vmatmul.mubr.f32.gmra.mrb[0].mxu0 %v52
  %v173 = vpop.f32.mrb[0].mxu0
  %v174 = vadd.f32 %v45, %v173
  %v175 = vpop.f32.mrb[0].mxu0
  %176 = vdwg.mxu0
  %v177 = vmul.f32 %v169, 0.5
  %v178 = vmul.f32 %v174, 0.5
  %v179 = vtanh.pop %v177
  %v180 = vtanh.pop %v178
  %v181 = vmul.f32 %v179, 0.5
  %v182 = vmul.f32 %v180, 0.5
  %v183 = vadd.f32 %v181, 0.5
  %v184 = vadd.f32 %v182, 0.5
  %s185 = scalar_lea.vmem %s1, 32
  %v186 = vld [vmem:[%s185] sm:$0xff]
  %v187 = vld [vmem:[%s185 + $0x8] sm:$0xff]
  %v188 = vld [vmem:[%s185 + $0x10] sm:$0xff]
  %v189 = vld [vmem:[%s185 + $0x18] sm:$0xff]
  %s190 = scalar_lea.vmem %s2, 32
  %v191 = vld [vmem:[%s190] sm:$0xff]
  %v192 = vld [vmem:[%s190 + $0x8] sm:$0xff]
  %v193 = vld [vmem:[%s190 + $0x10] sm:$0xff]
  %v194 = vld [vmem:[%s190 + $0x18] sm:$0xff]
  %196 = vset.pattern.permute.xlu0 0
  %197 = vperm.xlu0 %196, %v191
  %v198 = vpop.permute.xlu0 %197
  %201 = vset.pattern.permute.xlu0 0
  %202 = vperm.xlu0 %201, %v192
  %v203 = vpop.permute.xlu0 %202
  %206 = vset.pattern.permute.xlu0 0
  %207 = vperm.xlu0 %206, %v193
  %v208 = vpop.permute.xlu0 %207
  %211 = vset.pattern.permute.xlu0 0
  %212 = vperm.xlu0 %211, %v194
  %v213 = vpop.permute.xlu0 %212
  %vm215 = vcmask 130048
  %v217 = vsel %vm215, %v186, 0
  %v220 = vsel %vm215, %v187, 0
  %v223 = vsel %vm215, %v188, 0
  %v226 = vsel %vm215, %v189, 0
  %228 = vmatprep.subr.mxu0 0.0
  %229 = vmatpush1.msra.mxu0 %v183
  %230 = vmatprep.subr.mxu0 0.0
  %231 = vmatpush1.msra.mxu0 %v184
  %232 = vmatprep.subr.mxu0 0.0
  %233 = vmatpush1.msra.mxu0 0.0
  %234 = vmatprep.subr.mxu0 0.0
  %235 = vmatpush1.msra.mxu0 0.0
  %236 = vmatprep.subr.mxu0 0.0
  %237 = vmatpush1.msra.mxu0 0.0
  %238 = vmatprep.subr.mxu0 0.0
  %239 = vmatpush1.msra.mxu0 0.0
  %240 = vmatprep.subr.mxu0 0.0
  %241 = vmatpush1.msra.mxu0 0.0
  %242 = vmatprep.subr.mxu0 0.0
  %243 = vmatpush1.msra.mxu0 0.0
  %244 = vmatprep.subr.mxu0 0.0
  %245 = vmatpush1.msra.mxu0 0.0
  %246 = vmatprep.subr.mxu0 0.0
  %247 = vmatpush1.msra.mxu0 0.0
  %248 = vmatprep.subr.mxu0 0.0
  %249 = vmatpush1.msra.mxu0 0.0
  %250 = vmatprep.subr.mxu0 0.0
  %251 = vmatpush1.msra.mxu0 0.0
  %252 = vmatprep.subr.mxu0 0.0
  %253 = vmatpush1.msra.mxu0 0.0
  %254 = vmatprep.subr.mxu0 0.0
  %255 = vmatpush1.msra.mxu0 0.0
  %256 = vmatprep.subr.mxu0 0.0
  %257 = vmatpush1.msra.mxu0 0.0
  %258 = vmatprep.subr.mxu0 0.0
  %259 = vmatpush1.msra.mxu0 0.0
  %260 = vmatprep.subr.mxu0 0.0
  %261 = vmatpush1.msra.mxu0 0.0
  %262 = vmatprep.subr.mxu0 0.0
  %263 = vmatpush1.msra.mxu0 0.0
  %264 = vmatprep.subr.mxu0 0.0
  %265 = vmatpush1.msra.mxu0 0.0
  %266 = vmatprep.subr.mxu0 0.0
  %267 = vmatpush1.msra.mxu0 0.0
  %268 = vmatprep.subr.mxu0 0.0
  %269 = vmatpush1.msra.mxu0 0.0
  %270 = vmatprep.subr.mxu0 0.0
  %271 = vmatpush1.msra.mxu0 0.0
  %272 = vmatprep.subr.mxu0 0.0
  %273 = vmatpush1.msra.mxu0 0.0
  %274 = vmatprep.subr.mxu0 0.0
  %275 = vmatpush1.msra.mxu0 0.0
  %276 = vmatprep.subr.mxu0 0.0
  %277 = vmatpush1.msra.mxu0 0.0
  %278 = vmatprep.subr.mxu0 0.0
  %279 = vmatpush1.msra.mxu0 0.0
  %280 = vmatprep.subr.mxu0 0.0
  %281 = vmatpush1.msra.mxu0 0.0
  %282 = vmatprep.subr.mxu0 0.0
  %283 = vmatpush1.msra.mxu0 0.0
  %284 = vmatprep.subr.mxu0 0.0
  %285 = vmatpush1.msra.mxu0 0.0
  %286 = vmatprep.subr.mxu0 0.0
  %287 = vmatpush1.msra.mxu0 0.0
  %288 = vmatprep.subr.mxu0 0.0
  %289 = vmatpush1.msra.mxu0 0.0
  %290 = vmatprep.subr.mxu0 0.0
  %291 = vmatpush1.msra.mxu0 0.0
  %292 = vmatprep.mubr.f32.mxu0 0.0
  %293 = vmatmul.mubr.f32.gmra.mrb[0].mxu0 %v217
  %v294 = vpop.f32.mrb[0].mxu0
  %v295 = vadd.f32 %v198, %v294
  %v296 = vpop.f32.mrb[0].mxu0
  %297 = vmatprep.mubr.f32.mxu0 0.0
  %298 = vmatmul.mubr.f32.gmra.mrb[0].mxu0 %v220
  %v299 = vpop.f32.mrb[0].mxu0
  %v300 = vadd.f32 %v203, %v299
  %v301 = vpop.f32.mrb[0].mxu0
  %302 = vmatprep.mubr.f32.mxu0 0.0
  %303 = vmatmul.mubr.f32.gmra.mrb[0].mxu0 %v223
  %v304 = vpop.f32.mrb[0].mxu0
  %v305 = vadd.f32 %v208, %v304
  %v306 = vpop.f32.mrb[0].mxu0
  %307 = vmatprep.mubr.f32.mxu0 0.0
  %308 = vmatmul.mubr.f32.gmra.mrb[0].mxu0 %v226
  %v309 = vpop.f32.mrb[0].mxu0
  %v310 = vadd.f32 %v213, %v309
  %v311 = vpop.f32.mrb[0].mxu0
  %312 = vdwg.mxu0
  %v313 = vmul.f32 %v295, 0.5
  %v314 = vmul.f32 %v300, 0.5
  %v315 = vmul.f32 %v305, 0.5
  %v316 = vmul.f32 %v310, 0.5
  %v317 = vtanh.pop %v313
  %v318 = vtanh.pop %v314
  %v319 = vtanh.pop %v315
  %v320 = vtanh.pop %v316
  %v321 = vmul.f32 %v317, 0.5
  %v322 = vmul.f32 %v318, 0.5
  %v323 = vmul.f32 %v319, 0.5
  %v324 = vmul.f32 %v320, 0.5
  %v325 = vadd.f32 %v321, 0.5
  %v326 = vadd.f32 %v322, 0.5
  %v327 = vadd.f32 %v323, 0.5
  %v328 = vadd.f32 %v324, 0.5
  %s329 = scalar_lea.vmem %s1, 64
  %v330 = vld [vmem:[%s329] sm:$0xff]
  %v331 = vld [vmem:[%s329 + $0x8] sm:$0xff]
  %v332 = vld [vmem:[%s329 + $0x10] sm:$0xff]
  %v333 = vld [vmem:[%s329 + $0x18] sm:$0xff]
  %s334 = scalar_lea.vmem %s2, 64
  %v335 = vld [vmem:[%s334] sm:$0xff]
  %v336 = vld [vmem:[%s334 + $0x8] sm:$0xff]
  %v337 = vld [vmem:[%s334 + $0x10] sm:$0xff]
  %v338 = vld [vmem:[%s334 + $0x18] sm:$0xff]
  %340 = vset.pattern.permute.xlu0 0
  %341 = vperm.xlu0 %340, %v335
  %v342 = vpop.permute.xlu0 %341
  %345 = vset.pattern.permute.xlu0 0
  %346 = vperm.xlu0 %345, %v336
  %v347 = vpop.permute.xlu0 %346
  %350 = vset.pattern.permute.xlu0 0
  %351 = vperm.xlu0 %350, %v337
  %v352 = vpop.permute.xlu0 %351
  %355 = vset.pattern.permute.xlu0 0
  %356 = vperm.xlu0 %355, %v338
  %v357 = vpop.permute.xlu0 %356
  %vm359 = vcmask 261120
  %v361 = vsel %vm359, %v330, 0
  %v364 = vsel %vm359, %v331, 0
  %v367 = vsel %vm359, %v332, 0
  %v370 = vsel %vm359, %v333, 0
  %372 = vmatprep.subr.mxu0 0.0
  %373 = vmatpush1.msra.mxu0 %v325
  %374 = vmatprep.subr.mxu0 0.0
  %375 = vmatpush1.msra.mxu0 %v326
  %376 = vmatprep.subr.mxu0 0.0
  %377 = vmatpush1.msra.mxu0 %v327
  %378 = vmatprep.subr.mxu0 0.0
  %379 = vmatpush1.msra.mxu0 %v328
  %380 = vmatprep.subr.mxu0 0.0
  %381 = vmatpush1.msra.mxu0 0.0
  %382 = vmatprep.subr.mxu0 0.0
  %383 = vmatpush1.msra.mxu0 0.0
  %384 = vmatprep.subr.mxu0 0.0
  %385 = vmatpush1.msra.mxu0 0.0
  %386 = vmatprep.subr.mxu0 0.0
  %387 = vmatpush1.msra.mxu0 0.0
  %388 = vmatprep.subr.mxu0 0.0
  %389 = vmatpush1.msra.mxu0 0.0
  %390 = vmatprep.subr.mxu0 0.0
  %391 = vmatpush1.msra.mxu0 0.0
  %392 = vmatprep.subr.mxu0 0.0
  %393 = vmatpush1.msra.mxu0 0.0
  %394 = vmatprep.subr.mxu0 0.0
  %395 = vmatpush1.msra.mxu0 0.0
  %396 = vmatprep.subr.mxu0 0.0
  %397 = vmatpush1.msra.mxu0 0.0
  %398 = vmatprep.subr.mxu0 0.0
  %399 = vmatpush1.msra.mxu0 0.0
  %400 = vmatprep.subr.mxu0 0.0
  %401 = vmatpush1.msra.mxu0 0.0
  %402 = vmatprep.subr.mxu0 0.0
  %403 = vmatpush1.msra.mxu0 0.0
  %404 = vmatprep.subr.mxu0 0.0
  %405 = vmatpush1.msra.mxu0 0.0
  %406 = vmatprep.subr.mxu0 0.0
  %407 = vmatpush1.msra.mxu0 0.0
  %408 = vmatprep.subr.mxu0 0.0
  %409 = vmatpush1.msra.mxu0 0.0
  %410 = vmatprep.subr.mxu0 0.0
  %411 = vmatpush1.msra.mxu0 0.0
  %412 = vmatprep.subr.mxu0 0.0
  %413 = vmatpush1.msra.mxu0 0.0
  %414 = vmatprep.subr.mxu0 0.0
  %415 = vmatpush1.msra.mxu0 0.0
  %416 = vmatprep.subr.mxu0 0.0
  %417 = vmatpush1.msra.mxu0 0.0
  %418 = vmatprep.subr.mxu0 0.0
  %419 = vmatpush1.msra.mxu0 0.0
  %420 = vmatprep.subr.mxu0 0.0
  %421 = vmatpush1.msra.mxu0 0.0
  %422 = vmatprep.subr.mxu0 0.0
  %423 = vmatpush1.msra.mxu0 0.0
  %424 = vmatprep.subr.mxu0 0.0
  %425 = vmatpush1.msra.mxu0 0.0
  %426 = vmatprep.subr.mxu0 0.0
  %427 = vmatpush1.msra.mxu0 0.0
  %428 = vmatprep.subr.mxu0 0.0
  %429 = vmatpush1.msra.mxu0 0.0
  %430 = vmatprep.subr.mxu0 0.0
  %431 = vmatpush1.msra.mxu0 0.0
  %432 = vmatprep.subr.mxu0 0.0
  %433 = vmatpush1.msra.mxu0 0.0
  %434 = vmatprep.subr.mxu0 0.0
  %435 = vmatpush1.msra.mxu0 0.0
  %436 = vmatprep.mubr.f32.mxu0 0.0
  %437 = vmatmul.mubr.f32.gmra.mrb[0].mxu0 %v361
  %v438 = vpop.f32.mrb[0].mxu0
  %v439 = vadd.f32 %v342, %v438
  %v440 = vpop.f32.mrb[0].mxu0
  %441 = vmatprep.mubr.f32.mxu0 0.0
  %442 = vmatmul.mubr.f32.gmra.mrb[0].mxu0 %v364
  %v443 = vpop.f32.mrb[0].mxu0
  %v444 = vadd.f32 %v347, %v443
  %v445 = vpop.f32.mrb[0].mxu0
  %446 = vmatprep.mubr.f32.mxu0 0.0
  %447 = vmatmul.mubr.f32.gmra.mrb[0].mxu0 %v367
  %v448 = vpop.f32.mrb[0].mxu0
  %v449 = vadd.f32 %v352, %v448
  %v450 = vpop.f32.mrb[0].mxu0
  %451 = vmatprep.mubr.f32.mxu0 0.0
  %452 = vmatmul.mubr.f32.gmra.mrb[0].mxu0 %v370
  %v453 = vpop.f32.mrb[0].mxu0
  %v454 = vadd.f32 %v357, %v453
  %v455 = vpop.f32.mrb[0].mxu0
  %456 = vdwg.mxu0
  %v457 = vmul.f32 %v439, 0.5
  %v458 = vmul.f32 %v444, 0.5
  %v459 = vmul.f32 %v449, 0.5
  %v460 = vmul.f32 %v454, 0.5
  %v461 = vtanh.pop %v457
  %v462 = vtanh.pop %v458
  %v463 = vtanh.pop %v459
  %v464 = vtanh.pop %v460
  %v465 = vmul.f32 %v461, 0.5
  %v466 = vmul.f32 %v462, 0.5
  %v467 = vmul.f32 %v463, 0.5
  %v468 = vmul.f32 %v464, 0.5
  %v469 = vadd.f32 %v465, 0.5
  %v470 = vadd.f32 %v466, 0.5
  %v471 = vadd.f32 %v467, 0.5
  %v472 = vadd.f32 %v468, 0.5
  %s473 = scalar_lea.vmem %s1, 96
  %v474 = vld [vmem:[%s473] sm:$0xff]
  %v475 = vld [vmem:[%s473 + $0x8] sm:$0xff]
  %v476 = vld [vmem:[%s473 + $0x10] sm:$0xff]
  %v477 = vld [vmem:[%s473 + $0x18] sm:$0xff]
  %s478 = scalar_lea.vmem %s2, 96
  %v479 = vld [vmem:[%s478] sm:$0xff]
  %v480 = vld [vmem:[%s478 + $0x8] sm:$0xff]
  %v481 = vld [vmem:[%s478 + $0x10] sm:$0xff]
  %v482 = vld [vmem:[%s478 + $0x18] sm:$0xff]
  %484 = vset.pattern.permute.xlu0 0
  %485 = vperm.xlu0 %484, %v479
  %v486 = vpop.permute.xlu0 %485
  %489 = vset.pattern.permute.xlu0 0
  %490 = vperm.xlu0 %489, %v480
  %v491 = vpop.permute.xlu0 %490
  %494 = vset.pattern.permute.xlu0 0
  %495 = vperm.xlu0 %494, %v481
  %v496 = vpop.permute.xlu0 %495
  %499 = vset.pattern.permute.xlu0 0
  %500 = vperm.xlu0 %499, %v482
  %v501 = vpop.permute.xlu0 %500
  %v504 = vsel %vm359, %v474, 0
  %v507 = vsel %vm359, %v475, 0
  %v510 = vsel %vm359, %v476, 0
  %v513 = vsel %vm359, %v477, 0
  %515 = vmatprep.subr.mxu0 0.0
  %516 = vmatpush1.msra.mxu0 %v469
  %517 = vmatprep.subr.mxu0 0.0
  %518 = vmatpush1.msra.mxu0 %v470
  %519 = vmatprep.subr.mxu0 0.0
  %520 = vmatpush1.msra.mxu0 %v471
  %521 = vmatprep.subr.mxu0 0.0
  %522 = vmatpush1.msra.mxu0 %v472
  %523 = vmatprep.subr.mxu0 0.0
  %524 = vmatpush1.msra.mxu0 0.0
  %525 = vmatprep.subr.mxu0 0.0
  %526 = vmatpush1.msra.mxu0 0.0
  %527 = vmatprep.subr.mxu0 0.0
  %528 = vmatpush1.msra.mxu0 0.0
  %529 = vmatprep.subr.mxu0 0.0
  %530 = vmatpush1.msra.mxu0 0.0
  %531 = vmatprep.subr.mxu0 0.0
  %532 = vmatpush1.msra.mxu0 0.0
  %533 = vmatprep.subr.mxu0 0.0
  %534 = vmatpush1.msra.mxu0 0.0
  %535 = vmatprep.subr.mxu0 0.0
  %536 = vmatpush1.msra.mxu0 0.0
  %537 = vmatprep.subr.mxu0 0.0
  %538 = vmatpush1.msra.mxu0 0.0
  %539 = vmatprep.subr.mxu0 0.0
  %540 = vmatpush1.msra.mxu0 0.0
  %541 = vmatprep.subr.mxu0 0.0
  %542 = vmatpush1.msra.mxu0 0.0
  %543 = vmatprep.subr.mxu0 0.0
  %544 = vmatpush1.msra.mxu0 0.0
  %545 = vmatprep.subr.mxu0 0.0
  %546 = vmatpush1.msra.mxu0 0.0
  %547 = vmatprep.subr.mxu0 0.0
  %548 = vmatpush1.msra.mxu0 0.0
  %549 = vmatprep.subr.mxu0 0.0
  %550 = vmatpush1.msra.mxu0 0.0
  %551 = vmatprep.subr.mxu0 0.0
  %552 = vmatpush1.msra.mxu0 0.0
  %553 = vmatprep.subr.mxu0 0.0
  %554 = vmatpush1.msra.mxu0 0.0
  %555 = vmatprep.subr.mxu0 0.0
  %556 = vmatpush1.msra.mxu0 0.0
  %557 = vmatprep.subr.mxu0 0.0
  %558 = vmatpush1.msra.mxu0 0.0
  %559 = vmatprep.subr.mxu0 0.0
  %560 = vmatpush1.msra.mxu0 0.0
  %561 = vmatprep.subr.mxu0 0.0
  %562 = vmatpush1.msra.mxu0 0.0
  %563 = vmatprep.subr.mxu0 0.0
  %564 = vmatpush1.msra.mxu0 0.0
  %565 = vmatprep.subr.mxu0 0.0
  %566 = vmatpush1.msra.mxu0 0.0
  %567 = vmatprep.subr.mxu0 0.0
  %568 = vmatpush1.msra.mxu0 0.0
  %569 = vmatprep.subr.mxu0 0.0
  %570 = vmatpush1.msra.mxu0 0.0
  %571 = vmatprep.subr.mxu0 0.0
  %572 = vmatpush1.msra.mxu0 0.0
  %573 = vmatprep.subr.mxu0 0.0
  %574 = vmatpush1.msra.mxu0 0.0
  %575 = vmatprep.subr.mxu0 0.0
  %576 = vmatpush1.msra.mxu0 0.0
  %577 = vmatprep.subr.mxu0 0.0
  %578 = vmatpush1.msra.mxu0 0.0
  %579 = vmatprep.mubr.f32.mxu0 0.0
  %580 = vmatmul.mubr.f32.gmra.mrb[0].mxu0 %v504
  %v581 = vpop.f32.mrb[0].mxu0
  %v582 = vadd.f32 %v486, %v581
  %v583 = vpop.f32.mrb[0].mxu0
  %584 = vmatprep.mubr.f32.mxu0 0.0
  %585 = vmatmul.mubr.f32.gmra.mrb[0].mxu0 %v507
  %v586 = vpop.f32.mrb[0].mxu0
  %v587 = vadd.f32 %v491, %v586
  %v588 = vpop.f32.mrb[0].mxu0
  %589 = vmatprep.mubr.f32.mxu0 0.0
  %590 = vmatmul.mubr.f32.gmra.mrb[0].mxu0 %v510
  %v591 = vpop.f32.mrb[0].mxu0
  %v592 = vadd.f32 %v496, %v591
  %v593 = vpop.f32.mrb[0].mxu0
  %594 = vmatprep.mubr.f32.mxu0 0.0
  %595 = vmatmul.mubr.f32.gmra.mrb[0].mxu0 %v513
  %v596 = vpop.f32.mrb[0].mxu0
  %v597 = vadd.f32 %v501, %v596
  %v598 = vpop.f32.mrb[0].mxu0
  %599 = vdwg.mxu0
  %v600 = vmul.f32 %v582, 0.5
  %v601 = vmul.f32 %v587, 0.5
  %v602 = vmul.f32 %v592, 0.5
  %v603 = vmul.f32 %v597, 0.5
  %v604 = vtanh.pop %v600
  %v605 = vtanh.pop %v601
  %v606 = vtanh.pop %v602
  %v607 = vtanh.pop %v603
  %v608 = vmul.f32 %v604, 0.5
  %v609 = vmul.f32 %v605, 0.5
  %v610 = vmul.f32 %v606, 0.5
  %v611 = vmul.f32 %v607, 0.5
  %v612 = vadd.f32 %v608, 0.5
  %v613 = vadd.f32 %v609, 0.5
  %v614 = vadd.f32 %v610, 0.5
  %v615 = vadd.f32 %v611, 0.5
  %s616 = scalar_lea.vmem %s1, 128
  %v617 = vld [vmem:[%s616] sm:$0xff]
  %v618 = vld [vmem:[%s616 + $0x8] sm:$0xff]
  %s619 = scalar_lea.vmem %s2, 128
  %v620 = vld [vmem:[%s619] sm:$0xff]
  %v621 = vld [vmem:[%s619 + $0x8] sm:$0xff]
  %623 = vset.pattern.permute.xlu0 0
  %624 = vperm.xlu0 %623, %v620
  %v625 = vpop.permute.xlu0 %624
  %628 = vset.pattern.permute.xlu0 0
  %629 = vperm.xlu0 %628, %v621
  %v630 = vpop.permute.xlu0 %629
  %v633 = vsel %vm359, %v617, 0
  %v636 = vsel %vm359, %v618, 0
  %638 = vmatprep.subr.mxu0 0.0
  %639 = vmatpush1.msra.mxu0 %v612
  %640 = vmatprep.subr.mxu0 0.0
  %641 = vmatpush1.msra.mxu0 %v613
  %642 = vmatprep.subr.mxu0 0.0
  %643 = vmatpush1.msra.mxu0 %v614
  %644 = vmatprep.subr.mxu0 0.0
  %645 = vmatpush1.msra.mxu0 %v615
  %646 = vmatprep.subr.mxu0 0.0
  %647 = vmatpush1.msra.mxu0 0.0
  %648 = vmatprep.subr.mxu0 0.0
  %649 = vmatpush1.msra.mxu0 0.0
  %650 = vmatprep.subr.mxu0 0.0
  %651 = vmatpush1.msra.mxu0 0.0
  %652 = vmatprep.subr.mxu0 0.0
  %653 = vmatpush1.msra.mxu0 0.0
  %654 = vmatprep.subr.mxu0 0.0
  %655 = vmatpush1.msra.mxu0 0.0
  %656 = vmatprep.subr.mxu0 0.0
  %657 = vmatpush1.msra.mxu0 0.0
  %658 = vmatprep.subr.mxu0 0.0
  %659 = vmatpush1.msra.mxu0 0.0
  %660 = vmatprep.subr.mxu0 0.0
  %661 = vmatpush1.msra.mxu0 0.0
  %662 = vmatprep.subr.mxu0 0.0
  %663 = vmatpush1.msra.mxu0 0.0
  %664 = vmatprep.subr.mxu0 0.0
  %665 = vmatpush1.msra.mxu0 0.0
  %666 = vmatprep.subr.mxu0 0.0
  %667 = vmatpush1.msra.mxu0 0.0
  %668 = vmatprep.subr.mxu0 0.0
  %669 = vmatpush1.msra.mxu0 0.0
  %670 = vmatprep.subr.mxu0 0.0
  %671 = vmatpush1.msra.mxu0 0.0
  %672 = vmatprep.subr.mxu0 0.0
  %673 = vmatpush1.msra.mxu0 0.0
  %674 = vmatprep.subr.mxu0 0.0
  %675 = vmatpush1.msra.mxu0 0.0
  %676 = vmatprep.subr.mxu0 0.0
  %677 = vmatpush1.msra.mxu0 0.0
  %678 = vmatprep.subr.mxu0 0.0
  %679 = vmatpush1.msra.mxu0 0.0
  %680 = vmatprep.subr.mxu0 0.0
  %681 = vmatpush1.msra.mxu0 0.0
  %682 = vmatprep.subr.mxu0 0.0
  %683 = vmatpush1.msra.mxu0 0.0
  %684 = vmatprep.subr.mxu0 0.0
  %685 = vmatpush1.msra.mxu0 0.0
  %686 = vmatprep.subr.mxu0 0.0
  %687 = vmatpush1.msra.mxu0 0.0
  %688 = vmatprep.subr.mxu0 0.0
  %689 = vmatpush1.msra.mxu0 0.0
  %690 = vmatprep.subr.mxu0 0.0
  %691 = vmatpush1.msra.mxu0 0.0
  %692 = vmatprep.subr.mxu0 0.0
  %693 = vmatpush1.msra.mxu0 0.0
  %694 = vmatprep.subr.mxu0 0.0
  %695 = vmatpush1.msra.mxu0 0.0
  %696 = vmatprep.subr.mxu0 0.0
  %697 = vmatpush1.msra.mxu0 0.0
  %698 = vmatprep.subr.mxu0 0.0
  %699 = vmatpush1.msra.mxu0 0.0
  %700 = vmatprep.subr.mxu0 0.0
  %701 = vmatpush1.msra.mxu0 0.0
  %702 = vmatprep.mubr.f32.mxu0 0.0
  %703 = vmatmul.mubr.f32.gmra.mrb[0].mxu0 %v633
  %v704 = vpop.f32.mrb[0].mxu0
  %v705 = vadd.f32 %v625, %v704
  %v706 = vpop.f32.mrb[0].mxu0
  %707 = vmatprep.mubr.f32.mxu0 0.0
  %708 = vmatmul.mubr.f32.gmra.mrb[0].mxu0 %v636
  %v709 = vpop.f32.mrb[0].mxu0
  %v710 = vadd.f32 %v630, %v709
  %v711 = vpop.f32.mrb[0].mxu0
  %712 = vdwg.mxu0
  %v713 = vmul.f32 %v705, 0.5
  %v714 = vmul.f32 %v710, 0.5
  %v715 = vtanh.pop %v713
  %v716 = vtanh.pop %v714
  %v717 = vmul.f32 %v715, 0.5
  %v718 = vmul.f32 %v716, 0.5
  %v719 = vadd.f32 %v717, 0.5
  %v720 = vadd.f32 %v718, 0.5
  %s721 = scalar_lea.vmem %s1, 160
  %v722 = vld [vmem:[%s721] sm:$0xff]
  %v723 = vld [vmem:[%s721 + $0x8] sm:$0xff]
  %v724 = vld [vmem:[%s3] sm:$0x1]
  %v726 = vlaneseq
  %v727 = vshrl.u32 %v726, 7
  %v728 = vsub.s32 0, %v727
  %v729 = vrot.slane %v724, %v728
  %731 = vxpose.xlu0.b32.start [1/16] %v719, 128
  %732 = vxpose.xlu0.b32.cont [2/16] %v720, 128
  %733 = vxpose.xlu0.b32.cont [3/16] 0.0, 128
  %734 = vxpose.xlu0.b32.cont [4/16] 0.0, 128
  %735 = vxpose.xlu0.b32.cont [5/16] 0.0, 128
  %736 = vxpose.xlu0.b32.cont [6/16] 0.0, 128
  %737 = vxpose.xlu0.b32.cont [7/16] 0.0, 128
  %738 = vxpose.xlu0.b32.cont [8/16] 0.0, 128
  %739 = vxpose.xlu0.b32.cont [9/16] 0.0, 128
  %740 = vxpose.xlu0.b32.cont [10/16] 0.0, 128
  %741 = vxpose.xlu0.b32.cont [11/16] 0.0, 128
  %742 = vxpose.xlu0.b32.cont [12/16] 0.0, 128
  %743 = vxpose.xlu0.b32.cont [13/16] 0.0, 128
  %744 = vxpose.xlu0.b32.cont [14/16] 0.0, 128
  %745 = vxpose.xlu0.b32.cont [15/16] 0.0, 128
  %746 = vxpose.xlu0.b32.end [16/16] 0.0, 128
  %v747 = vpop.trf.xlu0
  %v748 = vpop.trf.xlu0
  %v749 = vpop.trf.xlu0
  %v750 = vpop.trf.xlu0
  %v751 = vpop.trf.xlu0
  %v752 = vpop.trf.xlu0
  %v753 = vpop.trf.xlu0
  %v754 = vpop.trf.xlu0
  %v755 = vpop.trf.xlu0
  %v756 = vpop.trf.xlu0
  %v757 = vpop.trf.xlu0
  %v758 = vpop.trf.xlu0
  %v759 = vpop.trf.xlu0
  %v760 = vpop.trf.xlu0
  %v761 = vpop.trf.xlu0
  %v762 = vpop.trf.xlu0
  %v764 = vsel %vm215, %v747, 0
  %v767 = vsel %vm215, %v748, 0
  %v770 = vsel %vm215, %v749, 0
  %v773 = vsel %vm215, %v750, 0
  %v776 = vsel %vm215, %v751, 0
  %v779 = vsel %vm215, %v752, 0
  %v782 = vsel %vm215, %v753, 0
  %v785 = vsel %vm215, %v754, 0
  %v788 = vsel %vm215, %v755, 0
  %v791 = vsel %vm215, %v756, 0
  %v794 = vsel %vm215, %v757, 0
  %v797 = vsel %vm215, %v758, 0
  %v800 = vsel %vm215, %v759, 0
  %v803 = vsel %vm215, %v760, 0
  %v806 = vsel %vm215, %v761, 0
  %v809 = vsel %vm215, %v762, 0
  %v812 = vsel %vm215, %v722, 0
  %v815 = vsel %vm215, %v723, 0
  %817 = vmatprep.subr.mxu0 0.0
  %818 = vmatpush1.xpose.msra.mxu0 %v812
  %819 = vmatprep.subr.mxu0 0.0
  %820 = vmatpush1.xpose.msra.mxu0 %v815
  %821 = vmatprep.subr.mxu0 0.0
  %822 = vmatpush1.xpose.msra.mxu0 0.0
  %823 = vmatprep.subr.mxu0 0.0
  %824 = vmatpush1.xpose.msra.mxu0 0.0
  %825 = vmatprep.subr.mxu0 0.0
  %826 = vmatpush1.xpose.msra.mxu0 0.0
  %827 = vmatprep.subr.mxu0 0.0
  %828 = vmatpush1.xpose.msra.mxu0 0.0
  %829 = vmatprep.subr.mxu0 0.0
  %830 = vmatpush1.xpose.msra.mxu0 0.0
  %831 = vmatprep.subr.mxu0 0.0
  %832 = vmatpush1.xpose.msra.mxu0 0.0
  %833 = vmatprep.subr.mxu0 0.0
  %834 = vmatpush1.xpose.msra.mxu0 0.0
  %835 = vmatprep.subr.mxu0 0.0
  %836 = vmatpush1.xpose.msra.mxu0 0.0
  %837 = vmatprep.subr.mxu0 0.0
  %838 = vmatpush1.xpose.msra.mxu0 0.0
  %839 = vmatprep.subr.mxu0 0.0
  %840 = vmatpush1.xpose.msra.mxu0 0.0
  %841 = vmatprep.subr.mxu0 0.0
  %842 = vmatpush1.xpose.msra.mxu0 0.0
  %843 = vmatprep.subr.mxu0 0.0
  %844 = vmatpush1.xpose.msra.mxu0 0.0
  %845 = vmatprep.subr.mxu0 0.0
  %846 = vmatpush1.xpose.msra.mxu0 0.0
  %847 = vmatprep.subr.mxu0 0.0
  %848 = vmatpush1.xpose.msra.mxu0 0.0
  %849 = vmatprep.subr.mxu0 0.0
  %850 = vmatpush1.xpose.msra.mxu0 0.0
  %851 = vmatprep.subr.mxu0 0.0
  %852 = vmatpush1.xpose.msra.mxu0 0.0
  %853 = vmatprep.subr.mxu0 0.0
  %854 = vmatpush1.xpose.msra.mxu0 0.0
  %855 = vmatprep.subr.mxu0 0.0
  %856 = vmatpush1.xpose.msra.mxu0 0.0
  %857 = vmatprep.subr.mxu0 0.0
  %858 = vmatpush1.xpose.msra.mxu0 0.0
  %859 = vmatprep.subr.mxu0 0.0
  %860 = vmatpush1.xpose.msra.mxu0 0.0
  %861 = vmatprep.subr.mxu0 0.0
  %862 = vmatpush1.xpose.msra.mxu0 0.0
  %863 = vmatprep.subr.mxu0 0.0
  %864 = vmatpush1.xpose.msra.mxu0 0.0
  %865 = vmatprep.subr.mxu0 0.0
  %866 = vmatpush1.xpose.msra.mxu0 0.0
  %867 = vmatprep.subr.mxu0 0.0
  %868 = vmatpush1.xpose.msra.mxu0 0.0
  %869 = vmatprep.subr.mxu0 0.0
  %870 = vmatpush1.xpose.msra.mxu0 0.0
  %871 = vmatprep.subr.mxu0 0.0
  %872 = vmatpush1.xpose.msra.mxu0 0.0
  %873 = vmatprep.subr.mxu0 0.0
  %874 = vmatpush1.xpose.msra.mxu0 0.0
  %875 = vmatprep.subr.mxu0 0.0
  %876 = vmatpush1.xpose.msra.mxu0 0.0
  %877 = vmatprep.subr.mxu0 0.0
  %878 = vmatpush1.xpose.msra.mxu0 0.0
  %879 = vmatprep.subr.mxu0 0.0
  %880 = vmatpush1.xpose.msra.mxu0 0.0
  %881 = vmatprep.mubr.f32.mxu0 0.0
  %882 = vmatmul.mubr.f32.gmra.mrb[0].mxu0 %v764
  %v883 = vpop.f32.mrb[0].mxu0
  %v884 = vadd.f32 %v729, %v883
  %v885 = vpop.f32.mrb[0].mxu0
  %886 = vmatprep.mubr.f32.mxu0 0.0
  %887 = vmatmul.mubr.f32.gmra.mrb[0].mxu0 %v767
  %v888 = vpop.f32.mrb[0].mxu0
  %v889 = vadd.f32 %v729, %v888
  %v890 = vpop.f32.mrb[0].mxu0
  %891 = vmatprep.mubr.f32.mxu0 0.0
  %892 = vmatmul.mubr.f32.gmra.mrb[0].mxu0 %v770
  %v893 = vpop.f32.mrb[0].mxu0
  %v894 = vadd.f32 %v729, %v893
  %v895 = vpop.f32.mrb[0].mxu0
  %896 = vmatprep.mubr.f32.mxu0 0.0
  %897 = vmatmul.mubr.f32.gmra.mrb[0].mxu0 %v773
  %v898 = vpop.f32.mrb[0].mxu0
  %v899 = vadd.f32 %v729, %v898
  %v900 = vpop.f32.mrb[0].mxu0
  %901 = vmatprep.mubr.f32.mxu0 0.0
  %902 = vmatmul.mubr.f32.gmra.mrb[0].mxu0 %v776
  %v903 = vpop.f32.mrb[0].mxu0
  %v904 = vadd.f32 %v729, %v903
  %v905 = vpop.f32.mrb[0].mxu0
  %906 = vmatprep.mubr.f32.mxu0 0.0
  %907 = vmatmul.mubr.f32.gmra.mrb[0].mxu0 %v779
  %v908 = vpop.f32.mrb[0].mxu0
  %v909 = vadd.f32 %v729, %v908
  %v910 = vpop.f32.mrb[0].mxu0
  %911 = vmatprep.mubr.f32.mxu0 0.0
  %912 = vmatmul.mubr.f32.gmra.mrb[0].mxu0 %v782
  %v913 = vpop.f32.mrb[0].mxu0
  %v914 = vadd.f32 %v729, %v913
  %v915 = vpop.f32.mrb[0].mxu0
  %916 = vmatprep.mubr.f32.mxu0 0.0
  %917 = vmatmul.mubr.f32.gmra.mrb[0].mxu0 %v785
  %v918 = vpop.f32.mrb[0].mxu0
  %v919 = vadd.f32 %v729, %v918
  %v920 = vpop.f32.mrb[0].mxu0
  %921 = vmatprep.mubr.f32.mxu0 0.0
  %922 = vmatmul.mubr.f32.gmra.mrb[0].mxu0 %v788
  %v923 = vpop.f32.mrb[0].mxu0
  %v924 = vadd.f32 %v729, %v923
  %v925 = vpop.f32.mrb[0].mxu0
  %926 = vmatprep.mubr.f32.mxu0 0.0
  %927 = vmatmul.mubr.f32.gmra.mrb[0].mxu0 %v791
  %v928 = vpop.f32.mrb[0].mxu0
  %v929 = vadd.f32 %v729, %v928
  %v930 = vpop.f32.mrb[0].mxu0
  %931 = vmatprep.mubr.f32.mxu0 0.0
  %932 = vmatmul.mubr.f32.gmra.mrb[0].mxu0 %v794
  %v933 = vpop.f32.mrb[0].mxu0
  %v934 = vadd.f32 %v729, %v933
  %v935 = vpop.f32.mrb[0].mxu0
  %936 = vmatprep.mubr.f32.mxu0 0.0
  %937 = vmatmul.mubr.f32.gmra.mrb[0].mxu0 %v797
  %v938 = vpop.f32.mrb[0].mxu0
  %v939 = vadd.f32 %v729, %v938
  %v940 = vpop.f32.mrb[0].mxu0
  %941 = vmatprep.mubr.f32.mxu0 0.0
  %942 = vmatmul.mubr.f32.gmra.mrb[0].mxu0 %v800
  %v943 = vpop.f32.mrb[0].mxu0
  %v944 = vadd.f32 %v729, %v943
  %v945 = vpop.f32.mrb[0].mxu0
  %946 = vmatprep.mubr.f32.mxu0 0.0
  %947 = vmatmul.mubr.f32.gmra.mrb[0].mxu0 %v803
  %v948 = vpop.f32.mrb[0].mxu0
  %v949 = vadd.f32 %v729, %v948
  %v950 = vpop.f32.mrb[0].mxu0
  %951 = vmatprep.mubr.f32.mxu0 0.0
  %952 = vmatmul.mubr.f32.gmra.mrb[0].mxu0 %v806
  %v953 = vpop.f32.mrb[0].mxu0
  %v954 = vadd.f32 %v729, %v953
  %v955 = vpop.f32.mrb[0].mxu0
  %956 = vmatprep.mubr.f32.mxu0 0.0
  %957 = vmatmul.mubr.f32.gmra.mrb[0].mxu0 %v809
  %v958 = vpop.f32.mrb[0].mxu0
  %v959 = vadd.f32 %v729, %v958
  %v960 = vpop.f32.mrb[0].mxu0
  %961 = vdwg.mxu0
  %v962 = vmul.f32 %v884, 0.5
  %v963 = vmul.f32 %v889, 0.5
  %v964 = vmul.f32 %v894, 0.5
  %v965 = vmul.f32 %v899, 0.5
  %v966 = vmul.f32 %v904, 0.5
  %v967 = vmul.f32 %v909, 0.5
  %v968 = vmul.f32 %v914, 0.5
  %v969 = vmul.f32 %v919, 0.5
  %v970 = vmul.f32 %v924, 0.5
  %v971 = vmul.f32 %v929, 0.5
  %v972 = vmul.f32 %v934, 0.5
  %v973 = vmul.f32 %v939, 0.5
  %v974 = vmul.f32 %v944, 0.5
  %v975 = vmul.f32 %v949, 0.5
  %v976 = vmul.f32 %v954, 0.5
  %v977 = vmul.f32 %v959, 0.5
  %v978 = vtanh.pop %v962
  %v979 = vtanh.pop %v963
  %v980 = vtanh.pop %v964
  %v981 = vtanh.pop %v965
  %v982 = vtanh.pop %v966
  %v983 = vtanh.pop %v967
  %v984 = vtanh.pop %v968
  %v985 = vtanh.pop %v969
  %v986 = vtanh.pop %v970
  %v987 = vtanh.pop %v971
  %v988 = vtanh.pop %v972
  %v989 = vtanh.pop %v973
  %v990 = vtanh.pop %v974
  %v991 = vtanh.pop %v975
  %v992 = vtanh.pop %v976
  %v993 = vtanh.pop %v977
  %v994 = vmul.f32 %v978, 0.5
  %v995 = vmul.f32 %v979, 0.5
  %v996 = vmul.f32 %v980, 0.5
  %v997 = vmul.f32 %v981, 0.5
  %v998 = vmul.f32 %v982, 0.5
  %v999 = vmul.f32 %v983, 0.5
  %v1000 = vmul.f32 %v984, 0.5
  %v1001 = vmul.f32 %v985, 0.5
  %v1002 = vmul.f32 %v986, 0.5
  %v1003 = vmul.f32 %v987, 0.5
  %v1004 = vmul.f32 %v988, 0.5
  %v1005 = vmul.f32 %v989, 0.5
  %v1006 = vmul.f32 %v990, 0.5
  %v1007 = vmul.f32 %v991, 0.5
  %v1008 = vmul.f32 %v992, 0.5
  %v1009 = vmul.f32 %v993, 0.5
  %v1010 = vadd.f32 %v994, 0.5
  %v1011 = vadd.f32 %v995, 0.5
  %v1012 = vadd.f32 %v996, 0.5
  %v1013 = vadd.f32 %v997, 0.5
  %v1014 = vadd.f32 %v998, 0.5
  %v1015 = vadd.f32 %v999, 0.5
  %v1016 = vadd.f32 %v1000, 0.5
  %v1017 = vadd.f32 %v1001, 0.5
  %v1018 = vadd.f32 %v1002, 0.5
  %v1019 = vadd.f32 %v1003, 0.5
  %v1020 = vadd.f32 %v1004, 0.5
  %v1021 = vadd.f32 %v1005, 0.5
  %v1022 = vadd.f32 %v1006, 0.5
  %v1023 = vadd.f32 %v1007, 0.5
  %v1024 = vadd.f32 %v1008, 0.5
  %v1025 = vadd.f32 %v1009, 0.5
  %1026 = vst.msk [vmem:[%s4] sm:$0xff] %vm47, %v1010
  %1027 = vst.msk [vmem:[%s4 + $0x8] sm:$0xff] %vm47, %v1011
  %1028 = vst.msk [vmem:[%s4 + $0x10] sm:$0xff] %vm47, %v1012
  %1029 = vst.msk [vmem:[%s4 + $0x18] sm:$0xff] %vm47, %v1013
  %1030 = vst.msk [vmem:[%s4 + $0x20] sm:$0xff] %vm47, %v1014
  %1031 = vst.msk [vmem:[%s4 + $0x28] sm:$0xff] %vm47, %v1015
  %1032 = vst.msk [vmem:[%s4 + $0x30] sm:$0xff] %vm47, %v1016
  %1033 = vst.msk [vmem:[%s4 + $0x38] sm:$0xff] %vm47, %v1017
  %1034 = vst.msk [vmem:[%s4 + $0x40] sm:$0xff] %vm47, %v1018
  %1035 = vst.msk [vmem:[%s4 + $0x48] sm:$0xff] %vm47, %v1019
  %1036 = vst.msk [vmem:[%s4 + $0x50] sm:$0xff] %vm47, %v1020
  %1037 = vst.msk [vmem:[%s4 + $0x58] sm:$0xff] %vm47, %v1021
  %1038 = vst.msk [vmem:[%s4 + $0x60] sm:$0xff] %vm47, %v1022
  %1039 = vst.msk [vmem:[%s4 + $0x68] sm:$0xff] %vm47, %v1023
  %1040 = vst.msk [vmem:[%s4 + $0x70] sm:$0xff] %vm47, %v1024
  %1041 = vst.msk [vmem:[%s4 + $0x78] sm:$0xff] %vm47, %v1025
  // Predicated region
  $region18: #{autoencoder_forward.1} parent=0 // pred_check
    _
  $region19: #{autoencoder_forward.1} parent=0 // pred_check_branch
    %1043 = sbr.rel (0) target = $region21
  $region20: #{autoencoder_forward.1} parent=0 // pred_region
    _
  $region21: #{autoencoder_forward.1} parent=0 // pred_fallthru
    _
  // Predicated region
  $region22: #{autoencoder_forward.1} parent=0 // pred_check
    _
  $region23: #{autoencoder_forward.1} parent=0 // pred_check_branch
    %1045 = sbr.rel (0) target = $region25
  $region24: #{autoencoder_forward.1} parent=0 // pred_region
    _
  $region25: #{autoencoder_forward.1} parent=0 // pred_fallthru
    _

</llo_original>
